<compile_context>
chip_gen: v6e
topology: v6e:2x2x1
jax: 0.10.0
libtpu: 0.0.40
codegen_flags: <defaults>
</compile_context>

<pallas_src>
import functools

import jax
import jax.numpy as jnp
from jax.experimental import pallas as pl
from jax.experimental.pallas import tpu as pltpu


def _cheb_conv_kernel(x_ref, att_t_ref, cheb_t_ref, w_ref, o_ref):
    # x_ref:      (1, N, F_in*T)        current batch's signal, time in lanes
    # att_t_ref:  (1, N, N)             spatial_attention[b]^T
    # cheb_t_ref: (K, N, N)             T_k^T (grid-invariant)
    # w_ref:      (K, F_in*T, F_out*T)  kron(Theta_k, I_T), bf16 (grid-invariant)
    # o_ref:      (1, N, F_out*T)
    K, N, _ = cheb_t_ref.shape
    C = x_ref.shape[-1]

    # Attention-modulated Chebyshev bases: ((T_k * att)^T)[i,j] = T_k[j,i]*att[b,j,i].
    # Elementwise product in f32 (v5e VPU has no bf16); bf16 only for the MXU.
    a3 = cheb_t_ref[...] * att_t_ref[...]                 # (K, N, N)
    a2 = a3.reshape(K * N, N).astype(jnp.bfloat16)        # tile-aligned merge (N % 8 == 0)

    x2 = x_ref[0].astype(jnp.bfloat16)                    # (N, F_in*T)

    # (1) Single stacked graph aggregation: (K*N, N) @ (N, F_in*T).
    r = jnp.dot(a2, x2, preferred_element_type=jnp.float32)   # (K*N, F_in*T) f32
    r3 = r.reshape(K, N, C).astype(jnp.bfloat16)               # tile-aligned split

    # (2) Fused Theta stage: batched (K,N,C) x (K,C,OT) contraction (the kron
    #     weight applies Theta_k per time step with time kept in lanes), then a
    #     cheap K-way reduction over whole slabs.
    y = jnp.einsum('knc,kco->kno', r3, w_ref[...],
                   preferred_element_type=jnp.float32)          # (K, N, F_out*T)
    acc = jnp.sum(y, axis=0)                                    # (N, F_out*T)

    o_ref[0] = jnp.maximum(acc, 0.0).astype(o_ref.dtype)


def _cheb_conv_impl(x, spatial_attention, cheb, theta, *, single_buffer):
    B, N, F_in, T = x.shape
    K = cheb.shape[0]
    F_out = theta.shape[-1]
    C, OT = F_in * T, F_out * T

    # Free contiguous reshape: keep time flattened into the lane dimension.
    x2 = x.reshape(B, N, C)

    # Tiny one-time transposes (~3 KiB total) so the kernel runs plain
    # row-major matmuls with no in-kernel XLU transposes.  cheb is a fixed
    # model parameter, so cheb_t would be precomputed once in real use.
    att_t = jnp.transpose(spatial_attention, (0, 2, 1))          # (B, N, N)
    cheb_t = jnp.transpose(cheb, (0, 2, 1))                      # (K, N, N)

    # W_k = kron(Theta_k, I_T): applies Theta_k independently per time step
    # while time stays flattened into lanes (keeps the 256-lane dense output
    # and a relayout-free kernel).  Built in bf16 to halve HBM/VMEM bytes.
    eye_t = jnp.eye(T, dtype=jnp.float32)
    w = (theta[:, :, None, :, None] * eye_t[None, None, :, None, :]
         ).reshape(K, C, OT).astype(jnp.bfloat16)

    # Grid-invariant inputs: request single buffering (halves their VMEM
    # footprint; matters for v7x's 64 MiB VMEM at production N/F/T).
    inv_kw = {"pipeline_mode": pl.Buffered(1)} if single_buffer else {}

    out2 = pl.pallas_call(
        _cheb_conv_kernel,
        out_shape=jax.ShapeDtypeStruct((B, N, OT), x.dtype),
        grid_spec=pltpu.PrefetchScalarGridSpec(
            num_scalar_prefetch=0,
            grid=(B,),
            in_specs=[
                pl.BlockSpec((1, N, C), lambda b: (b, 0, 0)),
                pl.BlockSpec((1, N, N), lambda b: (b, 0, 0)),
                pl.BlockSpec((K, N, N), lambda b: (0, 0, 0), **inv_kw),
                pl.BlockSpec((K, C, OT), lambda b: (0, 0, 0), **inv_kw),
            ],
            out_specs=pl.BlockSpec((1, N, OT), lambda b: (b, 0, 0)),
        ),
        # B axis parallel -> v7x shards the 2 batches over its 2 TensorCores.
        # (If production runs with B=1, split N over a parallel grid axis.)
        compiler_params=pltpu.CompilerParams(
            dimension_semantics=("parallel",)),
    )(x2, att_t, cheb_t, w)

    # Free contiguous reshape back to the PyTorch output layout.
    return out2.reshape(B, N, F_out, T)


_cheb_conv_single = jax.jit(functools.partial(_cheb_conv_impl, single_buffer=True))
_cheb_conv_double = jax.jit(functools.partial(_cheb_conv_impl, single_buffer=False))

_PREFER_SINGLE_BUFFER = True


def cheb_conv_with_sat(x, spatial_attention, cheb, theta):
    """x: (B, N, F_in, T); spatial_attention: (B, N, N);
    cheb: (K, N, N); theta: (K, F_in, F_out) -> (B, N, F_out, T)."""
    global _PREFER_SINGLE_BUFFER
    if _PREFER_SINGLE_BUFFER:
        try:
            return _cheb_conv_single(x, spatial_attention, cheb, theta)
        except Exception:
            # pipeline_mode=pl.Buffered(1) unsupported on this jax/Mosaic
            # version -> fall back to default double buffering.
            _PREFER_SINGLE_BUFFER = False
    return _cheb_conv_double(x, spatial_attention, cheb, theta)


def _reference(x, att, cheb, theta):
    # pure-JAX (f32) reference for correctness check
    t_k_at = cheb[None, :, :, :] * att[:, None, :, :]          # (B, K, N, N)
    rhs = jnp.einsum('bkji,bjft->bkift', t_k_at, x)            # (B, K, N, F_in, T)
    out = jnp.einsum('bkift,kfo->biot', rhs, theta)            # (B, N, F_out, T)
    return jax.nn.relu(out)


def _make_cheb_polynomials(key, N, K):
    # deterministic synthetic scaled Laplacian + Chebyshev recursion
    a = jax.random.uniform(key, (N, N), dtype=jnp.float32)
    w = 0.5 * (a + a.T)
    w = w * (1.0 - jnp.eye(N, dtype=jnp.float32))
    d = jnp.diag(jnp.sum(w, axis=1))
    lap = d - w
    eig_max = jnp.max(jnp.abs(jnp.linalg.eigvalsh(lap)))
    l_tilde = (2.0 * lap / eig_max) - jnp.eye(N, dtype=jnp.float32)
    polys = [jnp.eye(N, dtype=jnp.float32), l_tilde]
    for _ in range(2, K):
        polys.append(2.0 * l_tilde @ polys[-1] - polys[-2])
    return jnp.stack(polys[:K], axis=0)        # (K, N, N)


if __name__ == "__main__":
    B, N, F_in, F_out, T, K = 2, 16, 4, 32, 8, 3

    key = jax.random.PRNGKey(0)
    k_x, k_att, k_cheb, k_theta = jax.random.split(key, 4)

    x = jax.random.normal(k_x, (B, N, F_in, T), dtype=jnp.float32)
    spatial_attention = jax.nn.softmax(
        jax.random.normal(k_att, (B, N, N), dtype=jnp.float32), axis=-1)
    cheb = _make_cheb_polynomials(k_cheb, N, K)                 # (K, N, N)
    theta = 0.1 * jax.random.normal(k_theta, (K, F_in, F_out),  # Theta params
                                    dtype=jnp.float32)

    out = cheb_conv_with_sat(x, spatial_attention, cheb, theta)
    out = jax.block_until_ready(out)

    ref = _reference(x, spatial_attention, cheb, theta)
    assert out.shape == (B, N, F_out, T)
    # bf16 MXU operands in the kernel -> tolerance loosened vs the f32 reference.
    assert jnp.allclose(out, ref, atol=2e-2, rtol=2e-2), "mismatch vs reference"

    print("KERNEL_OK")
</pallas_src>

<mosaic_0001>
module attributes {stable_mosaic.version = 11 : i64} {
  func.func @_cheb_conv_kernel(%arg0: i32, %arg1: memref<1x16x32xf32, #tpu.memory_space<vmem>>, %arg2: memref<1x16x16xf32, #tpu.memory_space<vmem>>, %arg3: memref<3x16x16xf32, #tpu.memory_space<vmem>>, %arg4: memref<3x32x256xbf16, #tpu.memory_space<vmem>>, %arg5: memref<1x16x256xf32, #tpu.memory_space<vmem>>) attributes {dimension_semantics = [#tpu.dimension_semantics<parallel>], iteration_bounds = array<i64: 2>, scalar_prefetch = 0 : i64, scratch_operands = 0 : i64, tpu.core_type = #tpu.core_type<tc>, window_params = [{transform_indices = @transform_0, window_bounds = array<i64: 1, 16, 32>}, {transform_indices = @transform_1, window_bounds = array<i64: 1, 16, 16>}, {pipeline_mode = #tpu.pipeline_mode<synchronous>, transform_indices = @transform_2, window_bounds = array<i64: 3, 16, 16>}, {pipeline_mode = #tpu.pipeline_mode<synchronous>, transform_indices = @transform_3, window_bounds = array<i64: 3, 32, 256>}, {transform_indices = @transform_4, window_bounds = array<i64: 1, 16, 256>}]} {
    %c0 = arith.constant 0 : index
    %c0_0 = arith.constant 0 : index
    %c0_1 = arith.constant 0 : index
    %0 = vector.load %arg3[%c0, %c0_0, %c0_1] : memref<3x16x16xf32, #tpu.memory_space<vmem>>, vector<3x16x16xf32>
    %c0_2 = arith.constant 0 : index
    %c0_3 = arith.constant 0 : index
    %c0_4 = arith.constant 0 : index
    %1 = vector.load %arg2[%c0_2, %c0_3, %c0_4] : memref<1x16x16xf32, #tpu.memory_space<vmem>>, vector<1x16x16xf32>
    %2 = vector.broadcast %1 : vector<1x16x16xf32> to vector<3x16x16xf32>
    %3 = arith.mulf %0, %2 : vector<3x16x16xf32>
    %4 = vector.shape_cast %3 : vector<3x16x16xf32> to vector<48x16xf32>
    %5 = arith.truncf %4 : vector<48x16xf32> to vector<48x16xbf16>
    %c0_5 = arith.constant 0 : index
    %c0_6 = arith.constant 0 : index
    %c0_7 = arith.constant 0 : index
    %6 = vector.load %arg1[%c0_5, %c0_6, %c0_7] : memref<1x16x32xf32, #tpu.memory_space<vmem>>, vector<1x16x32xf32>
    %7 = vector.shape_cast %6 : vector<1x16x32xf32> to vector<16x32xf32>
    %8 = arith.truncf %7 : vector<16x32xf32> to vector<16x32xbf16>
    %cst = arith.constant dense<0.000000e+00> : vector<48x32xf32>
    %9 = tpu.matmul %5, %8, %cst {dimension_numbers = #tpu.dot_dimension_numbers<[1], [0], [0], [1], [0, 0, 1, 1], [], []>} : vector<48x16xbf16>, vector<16x32xbf16>, vector<48x32xf32> -> vector<48x32xf32>
    %10 = vector.shape_cast %9 : vector<48x32xf32> to vector<3x16x32xf32>
    %11 = arith.truncf %10 : vector<3x16x32xf32> to vector<3x16x32xbf16>
    %c0_8 = arith.constant 0 : index
    %c0_9 = arith.constant 0 : index
    %c0_10 = arith.constant 0 : index
    %12 = vector.load %arg4[%c0_8, %c0_9, %c0_10] : memref<3x32x256xbf16, #tpu.memory_space<vmem>>, vector<3x32x256xbf16>
    "tpu.trace_start"() <{level = 10 : i32, message = "knc,kco->kno"}> : () -> ()
    %cst_11 = arith.constant dense<0.000000e+00> : vector<3x16x256xf32>
    %13 = tpu.matmul %11, %12, %cst_11 {dimension_numbers = #tpu.dot_dimension_numbers<[2], [1], [1], [2], [0, 0, 0, 1, 1, 2], [0], [0]>} : vector<3x16x32xbf16>, vector<3x32x256xbf16>, vector<3x16x256xf32> -> vector<3x16x256xf32>
    "tpu.trace_stop"() : () -> ()
    %cst_12 = arith.constant dense<0.000000e+00> : vector<16x256xf32>
    %14 = vector.multi_reduction <add>, %13, %cst_12 [0] : vector<3x16x256xf32> to vector<16x256xf32>
    %cst_13 = arith.constant 0.000000e+00 : f32
    %15 = vector.broadcast %cst_13 : f32 to vector<16x256xf32>
    %16 = arith.maximumf %14, %15 : vector<16x256xf32>
    %c0_14 = arith.constant 0 : index
    %c0_15 = arith.constant 0 : index
    %c0_16 = arith.constant 0 : index
    %17 = vector.load %arg5[%c0_14, %c0_15, %c0_16] : memref<1x16x256xf32, #tpu.memory_space<vmem>>, vector<1x16x256xf32>
    %18 = vector.shape_cast %17 : vector<1x16x256xf32> to vector<16x256xf32>
    %19 = vector.shape_cast %16 : vector<16x256xf32> to vector<1x16x256xf32>
    tpu.vector_store %arg5[%c0_14, %c0_15, %c0_16], %19 {strides = array<i32>} : memref<1x16x256xf32, #tpu.memory_space<vmem>>, vector<1x16x256xf32>,
    return
  }
  func.func @transform_0(%arg0: i32) -> (i32, i32, i32) {
    %c0_i32 = arith.constant 0 : i32
    %c0_i32_0 = arith.constant 0 : i32
    %c0_i32_1 = arith.constant 0 : i32
    return %arg0, %c0_i32, %c0_i32_0 : i32, i32, i32
  }
  func.func @transform_1(%arg0: i32) -> (i32, i32, i32) {
    %c0_i32 = arith.constant 0 : i32
    %c0_i32_0 = arith.constant 0 : i32
    %c0_i32_1 = arith.constant 0 : i32
    return %arg0, %c0_i32, %c0_i32_0 : i32, i32, i32
  }
  func.func @transform_2(%arg0: i32) -> (i32, i32, i32) {
    %c0_i32 = arith.constant 0 : i32
    %c0_i32_0 = arith.constant 0 : i32
    %c0_i32_1 = arith.constant 0 : i32
    %c0_i32_2 = arith.constant 0 : i32
    return %c0_i32, %c0_i32_0, %c0_i32_1 : i32, i32, i32
  }
  func.func @transform_3(%arg0: i32) -> (i32, i32, i32) {
    %c0_i32 = arith.constant 0 : i32
    %c0_i32_0 = arith.constant 0 : i32
    %c0_i32_1 = arith.constant 0 : i32
    %c0_i32_2 = arith.constant 0 : i32
    return %c0_i32, %c0_i32_0, %c0_i32_1 : i32, i32, i32
  }
  func.func @transform_4(%arg0: i32) -> (i32, i32, i32) {
    %c0_i32 = arith.constant 0 : i32
    %c0_i32_0 = arith.constant 0 : i32
    %c0_i32_1 = arith.constant 0 : i32
    return %arg0, %c0_i32, %c0_i32_0 : i32, i32, i32
  }
}

module attributes {stable_mosaic.version = 11 : i64} {
  func.func @_cheb_conv_kernel(%arg0: i32, %arg1: memref<1x16x32xf32, #tpu.memory_space<vmem>>, %arg2: memref<1x16x16xf32, #tpu.memory_space<vmem>>, %arg3: memref<3x16x16xf32, #tpu.memory_space<vmem>>, %arg4: memref<3x32x256xbf16, #tpu.memory_space<vmem>>, %arg5: memref<1x16x256xf32, #tpu.memory_space<vmem>>) attributes {dimension_semantics = [#tpu.dimension_semantics<parallel>], iteration_bounds = array<i64: 2>, scalar_prefetch = 0 : i64, scratch_operands = 0 : i64, tpu.core_type = #tpu.core_type<tc>, window_params = [{transform_indices = @transform_0, window_bounds = array<i64: 1, 16, 32>}, {transform_indices = @transform_1, window_bounds = array<i64: 1, 16, 16>}, {pipeline_mode = #tpu.pipeline_mode<synchronous>, transform_indices = @transform_2, window_bounds = array<i64: 3, 16, 16>}, {pipeline_mode = #tpu.pipeline_mode<synchronous>, transform_indices = @transform_3, window_bounds = array<i64: 3, 32, 256>}, {transform_indices = @transform_4, window_bounds = array<i64: 1, 16, 256>}]} {
    %c0 = arith.constant 0 : index
    %c0_0 = arith.constant 0 : index
    %c0_1 = arith.constant 0 : index
    %0 = vector.load %arg3[%c0, %c0_0, %c0_1] : memref<3x16x16xf32, #tpu.memory_space<vmem>>, vector<3x16x16xf32>
    %c0_2 = arith.constant 0 : index
    %c0_3 = arith.constant 0 : index
    %c0_4 = arith.constant 0 : index
    %1 = vector.load %arg2[%c0_2, %c0_3, %c0_4] : memref<1x16x16xf32, #tpu.memory_space<vmem>>, vector<1x16x16xf32>
    %2 = vector.broadcast %1 : vector<1x16x16xf32> to vector<3x16x16xf32>
    %3 = arith.mulf %0, %2 : vector<3x16x16xf32>
    %4 = vector.shape_cast %3 : vector<3x16x16xf32> to vector<48x16xf32>
    %5 = arith.truncf %4 : vector<48x16xf32> to vector<48x16xbf16>
    %c0_5 = arith.constant 0 : index
    %c0_6 = arith.constant 0 : index
    %c0_7 = arith.constant 0 : index
    %6 = vector.load %arg1[%c0_5, %c0_6, %c0_7] : memref<1x16x32xf32, #tpu.memory_space<vmem>>, vector<1x16x32xf32>
    %7 = vector.shape_cast %6 : vector<1x16x32xf32> to vector<16x32xf32>
    %8 = arith.truncf %7 : vector<16x32xf32> to vector<16x32xbf16>
    %cst = arith.constant dense<0.000000e+00> : vector<48x32xf32>
    %9 = tpu.matmul %5, %8, %cst {dimension_numbers = #tpu.dot_dimension_numbers<[1], [0], [0], [1], [0, 0, 1, 1], [], []>} : vector<48x16xbf16>, vector<16x32xbf16>, vector<48x32xf32> -> vector<48x32xf32>
    %10 = vector.shape_cast %9 : vector<48x32xf32> to vector<3x16x32xf32>
    %11 = arith.truncf %10 : vector<3x16x32xf32> to vector<3x16x32xbf16>
    %c0_8 = arith.constant 0 : index
    %c0_9 = arith.constant 0 : index
    %c0_10 = arith.constant 0 : index
    %12 = vector.load %arg4[%c0_8, %c0_9, %c0_10] : memref<3x32x256xbf16, #tpu.memory_space<vmem>>, vector<3x32x256xbf16>
    "tpu.trace_start"() <{level = 10 : i32, message = "knc,kco->kno"}> : () -> ()
    %cst_11 = arith.constant dense<0.000000e+00> : vector<3x16x256xf32>
    %13 = tpu.matmul %11, %12, %cst_11 {dimension_numbers = #tpu.dot_dimension_numbers<[2], [1], [1], [2], [0, 0, 0, 1, 1, 2], [0], [0]>} : vector<3x16x32xbf16>, vector<3x32x256xbf16>, vector<3x16x256xf32> -> vector<3x16x256xf32>
    "tpu.trace_stop"() : () -> ()
    %cst_12 = arith.constant dense<0.000000e+00> : vector<16x256xf32>
    %14 = vector.multi_reduction <add>, %13, %cst_12 [0] : vector<3x16x256xf32> to vector<16x256xf32>
    %cst_13 = arith.constant 0.000000e+00 : f32
    %15 = vector.broadcast %cst_13 : f32 to vector<16x256xf32>
    %16 = arith.maximumf %14, %15 : vector<16x256xf32>
    %c0_14 = arith.constant 0 : index
    %c0_15 = arith.constant 0 : index
    %c0_16 = arith.constant 0 : index
    %17 = vector.load %arg5[%c0_14, %c0_15, %c0_16] : memref<1x16x256xf32, #tpu.memory_space<vmem>>, vector<1x16x256xf32>
    %18 = vector.shape_cast %17 : vector<1x16x256xf32> to vector<16x256xf32>
    %19 = vector.shape_cast %16 : vector<16x256xf32> to vector<1x16x256xf32>
    tpu.vector_store %arg5[%c0_14, %c0_15, %c0_16], %19 {strides = array<i32>} : memref<1x16x256xf32, #tpu.memory_space<vmem>>, vector<1x16x256xf32>,
    return
  }
  func.func @transform_0(%arg0: i32) -> (i32, i32, i32) {
    %c0_i32 = arith.constant 0 : i32
    %c0_i32_0 = arith.constant 0 : i32
    %c0_i32_1 = arith.constant 0 : i32
    return %arg0, %c0_i32, %c0_i32_0 : i32, i32, i32
  }
  func.func @transform_1(%arg0: i32) -> (i32, i32, i32) {
    %c0_i32 = arith.constant 0 : i32
    %c0_i32_0 = arith.constant 0 : i32
    %c0_i32_1 = arith.constant 0 : i32
    return %arg0, %c0_i32, %c0_i32_0 : i32, i32, i32
  }
  func.func @transform_2(%arg0: i32) -> (i32, i32, i32) {
    %c0_i32 = arith.constant 0 : i32
    %c0_i32_0 = arith.constant 0 : i32
    %c0_i32_1 = arith.constant 0 : i32
    %c0_i32_2 = arith.constant 0 : i32
    return %c0_i32, %c0_i32_0, %c0_i32_1 : i32, i32, i32
  }
  func.func @transform_3(%arg0: i32) -> (i32, i32, i32) {
    %c0_i32 = arith.constant 0 : i32
    %c0_i32_0 = arith.constant 0 : i32
    %c0_i32_1 = arith.constant 0 : i32
    %c0_i32_2 = arith.constant 0 : i32
    return %c0_i32, %c0_i32_0, %c0_i32_1 : i32, i32, i32
  }
  func.func @transform_4(%arg0: i32) -> (i32, i32, i32) {
    %c0_i32 = arith.constant 0 : i32
    %c0_i32_0 = arith.constant 0 : i32
    %c0_i32_1 = arith.constant 0 : i32
    return %arg0, %c0_i32, %c0_i32_0 : i32, i32, i32
  }
}

</mosaic_0001>

<llo_original>
// kernel: _cheb_conv_impl.1
$region0: #{_cheb_conv_impl.1}
  #allocation0 [shape = 'u32[]', space=smem, size = 0x4, offset = 0x4, fixed_abs, tag = 'smem constant byte address 0x4 - core index']
  #allocation1 [shape = 'u32[144,128]{1,0:T(1,128)}', space=vmem, size = 0x12000, scoped, tag = 'internal scratch']
  %s0 = inlined_call_operand.vmem [shape: f32[2,16,32], index: 0, kind: input, shape index: {}]
  %s1 = inlined_call_operand.vmem [shape: f32[2,16,16], index: 1, kind: input, shape index: {}]
  %s2 = inlined_call_operand.vmem [shape: f32[3,16,16], index: 2, kind: input, shape index: {}]
  %s3 = inlined_call_operand.vmem [shape: bf16[3,32,256], index: 3, kind: input, shape index: {}]
  %s4 = inlined_call_operand.vmem [shape: f32[2,16,256], index: 4, kind: output, shape index: {}]
  %s5 = sld [smem:[#allocation0]]
  $region49: #{_cheb_conv_impl.1} parent=0
    _
  %s7 = ssub.s32 1, %s5
  %s8 = scalar_select 0, %s7, %s5
  loop: start=0, step=1, limit=4
  $region2: #{_cheb_conv_impl.1} parent=0 // loop_pre_header
    _
  $region3: #{_cheb_conv_impl.1} parent=0 // loop_header
    %s10 = sphi 0, %s14
    %p11 = scmp.ge.s32.totalorder %s10, 4
    %s20 = sphi 0, %s22
    %s23 = sphi 0, %s20
    %s24 = sphi 0, %s23
    %s40 = sphi 0, %s24
    %s46 = sphi 0, %s48
    %s49 = sphi 0, %s46
    %s50 = sphi 0, %s49
    %s66 = sphi 0, %s50
    %s70 = sphi 0, %s70
    %s72 = sphi 0, %s70
    %s73 = sphi 0, %s72
    %s87 = sphi 0, %s73
    %s91 = sphi 0, %s91
    %s93 = sphi 0, %s91
    %s94 = sphi 0, %s93
    %s108 = sphi 0, %s94
    %s114 = sphi 0, %s116
    %s117 = sphi 0, %s114
    %s118 = sphi 0, %s117
    %s134 = sphi 0, %s118
  $region4: #{_cheb_conv_impl.1} parent=0 // loop_header_branch
    %13 = sbr.rel (%p11) target = $region8
  $region5: #{_cheb_conv_impl.1} parent=0 // loop_body
    %s15 = ssub.s32 %s10, 1
    %s16 = ssub.s32 %s10, 2
    %s17 = sadd.s32 %s10, 1
    %s18 = ssub.s32 %s10, %s17
    %p19 = scmp.eq.s32.totalorder %s18, 0
    %s21 = sadd.s32 %s20, 1
    %s22 = scalar_select %p19, %s20, %s21
    %p25 = pneg %p19
    %p26 = scmp.eq.s32.totalorder %s10, 1
    %p27 = por %p25, %p26
    %p28 = scmp.ne.s32.totalorder %s20, %s23
    %p29 = scmp.eq.s32.totalorder %s10, 0
    %p30 = por %p28, %p29
    %p31 = scmp.ne.s32.totalorder %s20, %s23
    %p32 = scmp.eq.s32.totalorder %s15, 1
    %p33 = por %p31, %p32
    %p34 = scmp.ne.s32.totalorder %s23, %s24
    %p35 = scmp.eq.s32.totalorder %s15, 0
    %p36 = por %p34, %p35
    %p37 = scmp.ne.s32.totalorder %s23, %s24
    %p38 = scmp.eq.s32.totalorder %s16, 1
    %p39 = por %p37, %p38
    %p41 = scmp.ne.s32.totalorder %s24, %s40
    %p42 = scmp.eq.s32.totalorder %s16, 0
    %p43 = por %p41, %p42
    %s44 = ssub.s32 %s10, %s17
    %p45 = scmp.eq.s32.totalorder %s44, 0
    %s47 = sadd.s32 %s46, 1
    %s48 = scalar_select %p45, %s46, %s47
    %p51 = pneg %p45
    %p52 = scmp.eq.s32.totalorder %s10, 1
    %p53 = por %p51, %p52
    %p54 = scmp.ne.s32.totalorder %s46, %s49
    %p55 = scmp.eq.s32.totalorder %s10, 0
    %p56 = por %p54, %p55
    %p57 = scmp.ne.s32.totalorder %s46, %s49
    %p58 = scmp.eq.s32.totalorder %s15, 1
    %p59 = por %p57, %p58
    %p60 = scmp.ne.s32.totalorder %s49, %s50
    %p61 = scmp.eq.s32.totalorder %s15, 0
    %p62 = por %p60, %p61
    %p63 = scmp.ne.s32.totalorder %s49, %s50
    %p64 = scmp.eq.s32.totalorder %s16, 1
    %p65 = por %p63, %p64
    %p67 = scmp.ne.s32.totalorder %s50, %s66
    %p68 = scmp.eq.s32.totalorder %s16, 0
    %p69 = por %p67, %p68
    %s71 = sadd.s32 %s70, 1
    %p74 = scmp.eq.s32.totalorder %s10, 1
    %p75 = scmp.ne.s32.totalorder %s70, %s72
    %p76 = scmp.eq.s32.totalorder %s10, 0
    %p77 = por %p75, %p76
    %p78 = scmp.ne.s32.totalorder %s70, %s72
    %p79 = scmp.eq.s32.totalorder %s15, 1
    %p80 = por %p78, %p79
    %p81 = scmp.ne.s32.totalorder %s72, %s73
    %p82 = scmp.eq.s32.totalorder %s15, 0
    %p83 = por %p81, %p82
    %p84 = scmp.ne.s32.totalorder %s72, %s73
    %p85 = scmp.eq.s32.totalorder %s16, 1
    %p86 = por %p84, %p85
    %p88 = scmp.ne.s32.totalorder %s73, %s87
    %p89 = scmp.eq.s32.totalorder %s16, 0
    %p90 = por %p88, %p89
    %s92 = sadd.s32 %s91, 1
    %p95 = scmp.eq.s32.totalorder %s10, 1
    %p96 = scmp.ne.s32.totalorder %s91, %s93
    %p97 = scmp.eq.s32.totalorder %s10, 0
    %p98 = por %p96, %p97
    %p99 = scmp.ne.s32.totalorder %s91, %s93
    %p100 = scmp.eq.s32.totalorder %s15, 1
    %p101 = por %p99, %p100
    %p102 = scmp.ne.s32.totalorder %s93, %s94
    %p103 = scmp.eq.s32.totalorder %s15, 0
    %p104 = por %p102, %p103
    %p105 = scmp.ne.s32.totalorder %s93, %s94
    %p106 = scmp.eq.s32.totalorder %s16, 1
    %p107 = por %p105, %p106
    %p109 = scmp.ne.s32.totalorder %s94, %s108
    %p110 = scmp.eq.s32.totalorder %s16, 0
    %p111 = por %p109, %p110
    %s112 = ssub.s32 %s10, %s17
    %p113 = scmp.eq.s32.totalorder %s112, 0
    %s115 = sadd.s32 %s114, 1
    %s116 = scalar_select %p113, %s114, %s115
    %p119 = pneg %p113
    %p120 = scmp.eq.s32.totalorder %s10, 1
    %p121 = por %p119, %p120
    %p122 = scmp.ne.s32.totalorder %s114, %s117
    %p123 = scmp.eq.s32.totalorder %s10, 0
    %p124 = por %p122, %p123
    %p125 = scmp.ne.s32.totalorder %s114, %s117
    %p126 = scmp.eq.s32.totalorder %s15, 1
    %p127 = por %p125, %p126
    %p128 = scmp.ne.s32.totalorder %s117, %s118
    %p129 = scmp.eq.s32.totalorder %s15, 0
    %p130 = por %p128, %p129
    %p131 = scmp.ne.s32.totalorder %s117, %s118
    %p132 = scmp.eq.s32.totalorder %s16, 1
    %p133 = por %p131, %p132
    %p135 = scmp.ne.s32.totalorder %s118, %s134
    %p136 = scmp.eq.s32.totalorder %s16, 0
    %p137 = por %p135, %p136
    %p138 = scmp.le.s32.totalorder 1, %s10
    %p139 = scmp.lt.s32.totalorder %s10, 3
    %p140 = pnand %p138, %p139
    %p141 = pneg %p140
    // Predicated region
    $region9: #{_cheb_conv_impl.1} parent=5 // pred_check
      _
    $region10: #{_cheb_conv_impl.1} parent=5 // pred_check_branch
      %143 = sbr.rel (%p140) target = $region12
    $region11: #{_cheb_conv_impl.1} parent=5 // pred_region
      %s144 = ssub.s32 %s10, 1
      // Predicated region
      $region13: #{_cheb_conv_impl.1} parent=11 // pred_check
        %p145 = pneg %p83
      $region14: #{_cheb_conv_impl.1} parent=11 // pred_check_branch
        %147 = sbr.rel (%p145) target = $region16
      $region15: #{_cheb_conv_impl.1} parent=11 // pred_region
        _
      $region16: #{_cheb_conv_impl.1} parent=11 // pred_fallthru
        _
      // Predicated region
      $region17: #{_cheb_conv_impl.1} parent=11 // pred_check
        %p148 = pneg %p104
      $region18: #{_cheb_conv_impl.1} parent=11 // pred_check_branch
        %150 = sbr.rel (%p148) target = $region20
      $region19: #{_cheb_conv_impl.1} parent=11 // pred_region
        _
      $region20: #{_cheb_conv_impl.1} parent=11 // pred_fallthru
        _
    $region12: #{_cheb_conv_impl.1} parent=5 // pred_fallthru
      _
    %p151 = scmp.lt.s32.totalorder %s10, 2
    // Predicated region
    $region21: #{_cheb_conv_impl.1} parent=5 // pred_check
      %p152 = pneg %p151
    $region22: #{_cheb_conv_impl.1} parent=5 // pred_check_branch
      %154 = sbr.rel (%p152) target = $region24
    $region23: #{_cheb_conv_impl.1} parent=5 // pred_region
      // Predicated region
      $region25: #{_cheb_conv_impl.1} parent=23 // pred_check
        %p155 = pneg %p30
      $region26: #{_cheb_conv_impl.1} parent=23 // pred_check_branch
        %157 = sbr.rel (%p155) target = $region28
      $region27: #{_cheb_conv_impl.1} parent=23 // pred_region
        %p158 = scmp.lt.s32.totalorder %s10, 1
        %s159 = scalar_select %p158, %s10, 1
        %s160 = smul.addr %s159, 2
        %s161 = smul.addr %s160, 8
        %s162 = scalar_lea.vmem %s0, %s161
      $region28: #{_cheb_conv_impl.1} parent=23 // pred_fallthru
        _
      // Predicated region
      $region29: #{_cheb_conv_impl.1} parent=23 // pred_check
        %p163 = pneg %p56
      $region30: #{_cheb_conv_impl.1} parent=23 // pred_check_branch
        %165 = sbr.rel (%p163) target = $region32
      $region31: #{_cheb_conv_impl.1} parent=23 // pred_region
        %p166 = scmp.lt.s32.totalorder %s10, 1
        %s167 = scalar_select %p166, %s10, 1
        %s168 = smul.addr %s167, 2
        %s169 = smul.addr %s168, 8
        %s170 = scalar_lea.vmem %s1, %s169
      $region32: #{_cheb_conv_impl.1} parent=23 // pred_fallthru
        _
    $region24: #{_cheb_conv_impl.1} parent=5 // pred_fallthru
      _
    %p171 = scmp.le.s32.totalorder 1, %s10
    %p172 = scmp.lt.s32.totalorder %s10, 3
    %p173 = pnand %p171, %p172
    %p174 = pneg %p173
    // Predicated region
    $region33: #{_cheb_conv_impl.1} parent=5 // pred_check
      _
    $region34: #{_cheb_conv_impl.1} parent=5 // pred_check_branch
      %176 = sbr.rel (%p173) target = $region36
    $region35: #{_cheb_conv_impl.1} parent=5 // pred_region
      %s177 = ssub.s32 %s10, 1
      %p178 = scmp.lt.s32.totalorder %s15, 1
      %s179 = scalar_select %p178, %s15, 1
      %s180 = smul.addr %s179, 2
      %s181 = smul.addr %s180, 8
      %s182 = scalar_lea.vmem %s0, %s181
      %p183 = pneg %p36
      %p184 = pneg %p33
      %p185 = scmp.lt.s32.totalorder %s15, 1
      %s186 = scalar_select %p185, %s15, 1
      %s187 = smul.addr %s186, 2
      %s188 = smul.addr %s187, 8
      %s189 = scalar_lea.vmem %s1, %s188
      %p190 = pneg %p62
      %p191 = pneg %p59
      %p192 = pneg %p83
      %p193 = pneg %p80
      %p194 = pneg %p104
      %p195 = pneg %p101
      %p196 = pneg %p130
      %p197 = pneg %p127
      %p198 = scmp.lt.s32.totalorder %s15, 1
      %s199 = scalar_select %p198, %s15, 1
      %s200 = smul.addr %s199, 4
      %s201 = smul.addr %s200, 8
      %s202 = scalar_lea.vmem %s4, %s201
      %p203 = scmp.lt.s32.totalorder %s15, 1
      %s204 = scalar_select %p203, %s15, 1
      %s205 = smul.addr %s204, 2
      %s206 = smul.addr %s205, 8
      %s207 = scalar_lea.vmem %s0, %s206
      %p208 = scmp.lt.s32.totalorder %s15, 1
      %s209 = scalar_select %p208, %s15, 1
      %s210 = smul.addr %s209, 2
      %s211 = smul.addr %s210, 8
      %s212 = scalar_lea.vmem %s1, %s211
      %p213 = scmp.lt.s32.totalorder %s15, 1
      %s214 = scalar_select %p213, %s15, 1
      %s215 = smul.addr %s214, 4
      %s216 = smul.addr %s215, 8
      %s217 = scalar_lea.vmem %s4, %s216
      %v219 = vld [vmem:[%s2] sm:$0xff]
      %v220 = vld [vmem:[%s2 + $0x8] sm:$0xff]
      %v221 = vld [vmem:[%s2 + $0x10] sm:$0xff]
      %v222 = vld [vmem:[%s2 + $0x18] sm:$0xff]
      %v223 = vld [vmem:[%s2 + $0x20] sm:$0xff]
      %v224 = vld [vmem:[%s2 + $0x28] sm:$0xff]
      %v225 = vld [vmem:[%s212] sm:$0xff]
      %v226 = vld [vmem:[%s212 + $0x8] sm:$0xff]
      %v227 = vmul.f32 %v219, %v225
      %v228 = vmul.f32 %v220, %v226
      %v229 = vmul.f32 %v221, %v225
      %v230 = vmul.f32 %v222, %v226
      %v231 = vmul.f32 %v223, %v225
      %v232 = vmul.f32 %v224, %v226
      %v233 = vpack.c.bf16 %v228, %v227
      %v234 = vpack.c.bf16 %v230, %v229
      %v235 = vpack.c.bf16 %v232, %v231
      %v236 = vld [vmem:[%s207] sm:$0xff]
      %v237 = vld [vmem:[%s207 + $0x8] sm:$0xff]
      %v238 = vpack.c.bf16 %v237, %v236
      %vm239 = vcmask 130048
      %v241 = vsel %vm239, %v233, 0
      %v244 = vsel %vm239, %v234, 0
      %v247 = vsel %vm239, %v235, 0
      %249 = vmatprep.subr.bf16.mxu0 0
      %250 = vmatpush1.bf16.msra.mxu0 0
      %251 = vmatprep.subr.bf16.mxu0 0
      %252 = vmatpush1.bf16.msra.mxu0 0
      %253 = vmatprep.subr.bf16.mxu0 0
      %254 = vmatpush1.bf16.msra.mxu0 0
      %255 = vmatprep.subr.bf16.mxu0 0
      %256 = vmatpush1.bf16.msra.mxu0 0
      %257 = vmatprep.subr.bf16.mxu0 0
      %258 = vmatpush1.bf16.msra.mxu0 0
      %259 = vmatprep.subr.bf16.mxu0 0
      %260 = vmatpush1.bf16.msra.mxu0 0
      %261 = vmatprep.subr.bf16.mxu0 0
      %262 = vmatpush1.bf16.msra.mxu0 0
      %263 = vmatprep.subr.bf16.mxu0 0
      %264 = vmatpush1.bf16.msra.mxu0 %v238
      %265 = vmatprep.subr.bf16.mxu0 0
      %266 = vmatpush2.bf16.msra.mxu0 0
      %267 = vmatprep.subr.bf16.mxu0 0
      %268 = vmatpush2.bf16.msra.mxu0 0
      %269 = vmatprep.subr.bf16.mxu0 0
      %270 = vmatpush2.bf16.msra.mxu0 0
      %271 = vmatprep.subr.bf16.mxu0 0
      %272 = vmatpush2.bf16.msra.mxu0 0
      %273 = vmatprep.subr.bf16.mxu0 0
      %274 = vmatpush2.bf16.msra.mxu0 0
      %275 = vmatprep.subr.bf16.mxu0 0
      %276 = vmatpush2.bf16.msra.mxu0 0
      %277 = vmatprep.subr.bf16.mxu0 0
      %278 = vmatpush2.bf16.msra.mxu0 0
      %279 = vmatprep.subr.bf16.mxu0 0
      %280 = vmatpush2.bf16.msra.mxu0 0
      %281 = vmatprep.mubr.bf16.mxu0 0
      %282 = vmatmul.mubr.bf16.gmra.mxu0 %v241
      %v283 = vpop.f32.mrf.mxu0
      %v284 = vadd.f32 0.0, %v283
      %v285 = vpop.f32.mrf.mxu0
      %v286 = vpop.f32.mrf.mxu0
      %v287 = vadd.f32 0.0, %v286
      %v288 = vpop.f32.mrf.mxu0
      %289 = vmatprep.mubr.bf16.mxu0 0
      %290 = vmatmul.mubr.bf16.gmra.mxu0 %v244
      %v291 = vpop.f32.mrf.mxu0
      %v292 = vadd.f32 0.0, %v291
      %v293 = vpop.f32.mrf.mxu0
      %v294 = vpop.f32.mrf.mxu0
      %v295 = vadd.f32 0.0, %v294
      %v296 = vpop.f32.mrf.mxu0
      %297 = vmatprep.mubr.bf16.mxu0 0
      %298 = vmatmul.mubr.bf16.gmra.mxu0 %v247
      %v299 = vpop.f32.mrf.mxu0
      %v300 = vadd.f32 0.0, %v299
      %v301 = vpop.f32.mrf.mxu0
      %v302 = vpop.f32.mrf.mxu0
      %v303 = vadd.f32 0.0, %v302
      %v304 = vpop.f32.mrf.mxu0
      %305 = vdwg.mxu0
      %v306 = vpack.c.bf16 %v287, %v284
      %v307 = vpack.c.bf16 %v295, %v292
      %v308 = vpack.c.bf16 %v303, %v300
      %v309 = vld [vmem:[%s3] sm:$0xff]
      %v310 = vld [vmem:[%s3 + $0x8] sm:$0xff]
      %v311 = vld [vmem:[%s3 + $0x10] sm:$0xff]
      %v312 = vld [vmem:[%s3 + $0x18] sm:$0xff]
      %v313 = vld [vmem:[%s3 + $0x20] sm:$0xff]
      %v314 = vld [vmem:[%s3 + $0x28] sm:$0xff]
      %v315 = vld [vmem:[%s3 + $0x30] sm:$0xff]
      %v316 = vld [vmem:[%s3 + $0x38] sm:$0xff]
      %v317 = vld [vmem:[%s3 + $0x40] sm:$0xff]
      %v318 = vld [vmem:[%s3 + $0x48] sm:$0xff]
      %v319 = vld [vmem:[%s3 + $0x50] sm:$0xff]
      %v320 = vld [vmem:[%s3 + $0x58] sm:$0xff]
      %v325 = vunpack.c.l.b16 %v309
      %v326 = vunpack.c.h.b16 %v309
      %v327 = vunpack.c.l.b16 %v310
      %v328 = vunpack.c.h.b16 %v310
      %v329 = vunpack.c.l.b16 %v311
      %v330 = vunpack.c.h.b16 %v311
      %v331 = vunpack.c.l.b16 %v312
      %v332 = vunpack.c.h.b16 %v312
      %v333 = vpack.c.b16 %v327, %v325
      %v334 = vpack.c.b16 %v328, %v326
      %v335 = vpack.c.b16 %v331, %v329
      %v336 = vpack.c.b16 %v332, %v330
      %vm341 = vcmask 261120
      %v343 = vsel %vm341, %v306, 0
      %345 = vmatprep.subr.bf16.mxu0 0
      %346 = vmatpush1.bf16.msra.mxu0 0
      %347 = vmatprep.subr.bf16.mxu0 0
      %348 = vmatpush1.bf16.msra.mxu0 0
      %349 = vmatprep.subr.bf16.mxu0 0
      %350 = vmatpush1.bf16.msra.mxu0 0
      %351 = vmatprep.subr.bf16.mxu0 0
      %352 = vmatpush1.bf16.msra.mxu0 0
      %353 = vmatprep.subr.bf16.mxu0 0
      %354 = vmatpush1.bf16.msra.mxu0 0
      %355 = vmatprep.subr.bf16.mxu0 0
      %356 = vmatpush1.bf16.msra.mxu0 0
      %357 = vmatprep.subr.bf16.mxu0 %v336
      %358 = vmatpush1.bf16.msra.mxu0 %v335
      %359 = vmatprep.subr.bf16.mxu0 %v334
      %360 = vmatpush1.bf16.msra.mxu0 %v333
      %361 = vmatprep.subr.bf16.mxu0 0
      %362 = vmatpush2.bf16.msra.mxu0 0
      %363 = vmatprep.subr.bf16.mxu0 0
      %364 = vmatpush2.bf16.msra.mxu0 0
      %365 = vmatprep.subr.bf16.mxu0 0
      %366 = vmatpush2.bf16.msra.mxu0 0
      %367 = vmatprep.subr.bf16.mxu0 0
      %368 = vmatpush2.bf16.msra.mxu0 0
      %369 = vmatprep.subr.bf16.mxu0 0
      %370 = vmatpush2.bf16.msra.mxu0 0
      %371 = vmatprep.subr.bf16.mxu0 0
      %372 = vmatpush2.bf16.msra.mxu0 0
      %373 = vmatprep.subr.bf16.mxu0 0
      %374 = vmatpush2.bf16.msra.mxu0 0
      %375 = vmatprep.subr.bf16.mxu0 0
      %376 = vmatpush2.bf16.msra.mxu0 0
      %377 = vmatprep.mubr.bf16.mxu0 0
      %378 = vmatmul.mubr.bf16.gmra.mxu0 %v343
      %v379 = vpop.f32.mrf.mxu0
      %v380 = vadd.f32 0.0, %v379
      %v381 = vpop.f32.mrf.mxu0
      %v382 = vadd.f32 0.0, %v381
      %v383 = vpop.f32.mrf.mxu0
      %v384 = vadd.f32 0.0, %v383
      %v385 = vpop.f32.mrf.mxu0
      %v386 = vadd.f32 0.0, %v385
      %387 = vdwg.mxu0
      %v392 = vunpack.c.l.b16 %v313
      %v393 = vunpack.c.h.b16 %v313
      %v394 = vunpack.c.l.b16 %v314
      %v395 = vunpack.c.h.b16 %v314
      %v396 = vunpack.c.l.b16 %v315
      %v397 = vunpack.c.h.b16 %v315
      %v398 = vunpack.c.l.b16 %v316
      %v399 = vunpack.c.h.b16 %v316
      %v400 = vpack.c.b16 %v394, %v392
      %v401 = vpack.c.b16 %v395, %v393
      %v402 = vpack.c.b16 %v398, %v396
      %v403 = vpack.c.b16 %v399, %v397
      %v409 = vsel %vm341, %v307, 0
      %411 = vmatprep.subr.bf16.mxu0 0
      %412 = vmatpush1.bf16.msra.mxu0 0
      %413 = vmatprep.subr.bf16.mxu0 0
      %414 = vmatpush1.bf16.msra.mxu0 0
      %415 = vmatprep.subr.bf16.mxu0 0
      %416 = vmatpush1.bf16.msra.mxu0 0
      %417 = vmatprep.subr.bf16.mxu0 0
      %418 = vmatpush1.bf16.msra.mxu0 0
      %419 = vmatprep.subr.bf16.mxu0 0
      %420 = vmatpush1.bf16.msra.mxu0 0
      %421 = vmatprep.subr.bf16.mxu0 0
      %422 = vmatpush1.bf16.msra.mxu0 0
      %423 = vmatprep.subr.bf16.mxu0 %v403
      %424 = vmatpush1.bf16.msra.mxu0 %v402
      %425 = vmatprep.subr.bf16.mxu0 %v401
      %426 = vmatpush1.bf16.msra.mxu0 %v400
      %427 = vmatprep.subr.bf16.mxu0 0
      %428 = vmatpush2.bf16.msra.mxu0 0
      %429 = vmatprep.subr.bf16.mxu0 0
      %430 = vmatpush2.bf16.msra.mxu0 0
      %431 = vmatprep.subr.bf16.mxu0 0
      %432 = vmatpush2.bf16.msra.mxu0 0
      %433 = vmatprep.subr.bf16.mxu0 0
      %434 = vmatpush2.bf16.msra.mxu0 0
      %435 = vmatprep.subr.bf16.mxu0 0
      %436 = vmatpush2.bf16.msra.mxu0 0
      %437 = vmatprep.subr.bf16.mxu0 0
      %438 = vmatpush2.bf16.msra.mxu0 0
      %439 = vmatprep.subr.bf16.mxu0 0
      %440 = vmatpush2.bf16.msra.mxu0 0
      %441 = vmatprep.subr.bf16.mxu0 0
      %442 = vmatpush2.bf16.msra.mxu0 0
      %443 = vmatprep.mubr.bf16.mxu0 0
      %444 = vmatmul.mubr.bf16.gmra.mxu0 %v409
      %v445 = vpop.f32.mrf.mxu0
      %v446 = vadd.f32 0.0, %v445
      %v447 = vpop.f32.mrf.mxu0
      %v448 = vadd.f32 0.0, %v447
      %v449 = vpop.f32.mrf.mxu0
      %v450 = vadd.f32 0.0, %v449
      %v451 = vpop.f32.mrf.mxu0
      %v452 = vadd.f32 0.0, %v451
      %453 = vdwg.mxu0
      %v458 = vunpack.c.l.b16 %v317
      %v459 = vunpack.c.h.b16 %v317
      %v460 = vunpack.c.l.b16 %v318
      %v461 = vunpack.c.h.b16 %v318
      %v462 = vunpack.c.l.b16 %v319
      %v463 = vunpack.c.h.b16 %v319
      %v464 = vunpack.c.l.b16 %v320
      %v465 = vunpack.c.h.b16 %v320
      %v466 = vpack.c.b16 %v460, %v458
      %v467 = vpack.c.b16 %v461, %v459
      %v468 = vpack.c.b16 %v464, %v462
      %v469 = vpack.c.b16 %v465, %v463
      %v475 = vsel %vm341, %v308, 0
      %477 = vmatprep.subr.bf16.mxu0 0
      %478 = vmatpush1.bf16.msra.mxu0 0
      %479 = vmatprep.subr.bf16.mxu0 0
      %480 = vmatpush1.bf16.msra.mxu0 0
      %481 = vmatprep.subr.bf16.mxu0 0
      %482 = vmatpush1.bf16.msra.mxu0 0
      %483 = vmatprep.subr.bf16.mxu0 0
      %484 = vmatpush1.bf16.msra.mxu0 0
      %485 = vmatprep.subr.bf16.mxu0 0
      %486 = vmatpush1.bf16.msra.mxu0 0
      %487 = vmatprep.subr.bf16.mxu0 0
      %488 = vmatpush1.bf16.msra.mxu0 0
      %489 = vmatprep.subr.bf16.mxu0 %v469
      %490 = vmatpush1.bf16.msra.mxu0 %v468
      %491 = vmatprep.subr.bf16.mxu0 %v467
      %492 = vmatpush1.bf16.msra.mxu0 %v466
      %493 = vmatprep.subr.bf16.mxu0 0
      %494 = vmatpush2.bf16.msra.mxu0 0
      %495 = vmatprep.subr.bf16.mxu0 0
      %496 = vmatpush2.bf16.msra.mxu0 0
      %497 = vmatprep.subr.bf16.mxu0 0
      %498 = vmatpush2.bf16.msra.mxu0 0
      %499 = vmatprep.subr.bf16.mxu0 0
      %500 = vmatpush2.bf16.msra.mxu0 0
      %501 = vmatprep.subr.bf16.mxu0 0
      %502 = vmatpush2.bf16.msra.mxu0 0
      %503 = vmatprep.subr.bf16.mxu0 0
      %504 = vmatpush2.bf16.msra.mxu0 0
      %505 = vmatprep.subr.bf16.mxu0 0
      %506 = vmatpush2.bf16.msra.mxu0 0
      %507 = vmatprep.subr.bf16.mxu0 0
      %508 = vmatpush2.bf16.msra.mxu0 0
      %509 = vmatprep.mubr.bf16.mxu0 0
      %510 = vmatmul.mubr.bf16.gmra.mxu0 %v475
      %v511 = vpop.f32.mrf.mxu0
      %v512 = vadd.f32 0.0, %v511
      %v513 = vpop.f32.mrf.mxu0
      %v514 = vadd.f32 0.0, %v513
      %v515 = vpop.f32.mrf.mxu0
      %v516 = vadd.f32 0.0, %v515
      %v517 = vpop.f32.mrf.mxu0
      %v518 = vadd.f32 0.0, %v517
      %519 = vdwg.mxu0
      %v520 = vadd.f32 %v380, %v446
      %v521 = vadd.f32 %v520, %v512
      %v522 = vadd.f32 %v382, %v448
      %v523 = vadd.f32 %v522, %v514
      %v524 = vadd.f32 %v384, %v450
      %v525 = vadd.f32 %v524, %v516
      %v526 = vadd.f32 %v386, %v452
      %v527 = vadd.f32 %v526, %v518
      %v528 = vmax.f32 %v521, 0.0
      %v529 = vmax.f32 %v523, 0.0
      %v530 = vmax.f32 %v525, 0.0
      %v531 = vmax.f32 %v527, 0.0
      %532 = vst [vmem:[%s217] sm:$0xff] %v528
      %533 = vst [vmem:[%s217 + $0x8] sm:$0xff] %v529
      %534 = vst [vmem:[%s217 + $0x10] sm:$0xff] %v530
      %535 = vst [vmem:[%s217 + $0x18] sm:$0xff] %v531
      %p536 = scmp.lt.s32.totalorder %s15, 1
      %s537 = scalar_select %p536, %s15, 1
      %s538 = smul.addr %s537, 4
      %s539 = smul.addr %s538, 8
      %s540 = scalar_lea.vmem %s4, %s539
      // Predicated region
      $region37: #{_cheb_conv_impl.1} parent=35 // pred_check
        %p541 = pneg %p127
      $region38: #{_cheb_conv_impl.1} parent=35 // pred_check_branch
        %543 = sbr.rel (%p541) target = $region40
      $region39: #{_cheb_conv_impl.1} parent=35 // pred_region
        _
      $region40: #{_cheb_conv_impl.1} parent=35 // pred_fallthru
        _
    $region36: #{_cheb_conv_impl.1} parent=5 // pred_fallthru
      _
    %p544 = scmp.le.s32.totalorder 2, %s10
    // Predicated region
    $region41: #{_cheb_conv_impl.1} parent=5 // pred_check
      %p545 = pneg %p544
    $region42: #{_cheb_conv_impl.1} parent=5 // pred_check_branch
      %547 = sbr.rel (%p545) target = $region44
    $region43: #{_cheb_conv_impl.1} parent=5 // pred_region
      %s548 = ssub.s32 %s10, 2
      // Predicated region
      $region45: #{_cheb_conv_impl.1} parent=43 // pred_check
        %p549 = pneg %p133
      $region46: #{_cheb_conv_impl.1} parent=43 // pred_check_branch
        %551 = sbr.rel (%p549) target = $region48
      $region47: #{_cheb_conv_impl.1} parent=43 // pred_region
        %p552 = scmp.lt.s32.totalorder %s16, 1
        %s553 = scalar_select %p552, %s16, 1
        %s554 = smul.addr %s553, 4
        %s555 = smul.addr %s554, 8
        %s556 = scalar_lea.vmem %s4, %s555
      $region48: #{_cheb_conv_impl.1} parent=43 // pred_fallthru
        _
    $region44: #{_cheb_conv_impl.1} parent=5 // pred_fallthru
      _
  $region6: #{_cheb_conv_impl.1} parent=0 // loop_footer
    %s14 = sadd.s32 1, %s10
  $region7: #{_cheb_conv_impl.1} parent=0 // loop_footer_branch
    %9 = sbr.rel target = $region3
  $region8: #{_cheb_conv_impl.1} parent=0 // loop_exit
    _

// kernel: _cheb_conv_impl.1
$region0: #{_cheb_conv_impl.1}
  #allocation0 [shape = 'u32[]', space=smem, size = 0x4, offset = 0x4, fixed_abs, tag = 'smem constant byte address 0x4 - core index']
  #allocation1 [shape = 'u32[144,128]{1,0:T(1,128)}', space=vmem, size = 0x12000, scoped, tag = 'internal scratch']
  %s0 = inlined_call_operand.vmem [shape: f32[2,16,32], index: 0, kind: input, shape index: {}]
  %s1 = inlined_call_operand.vmem [shape: f32[2,16,16], index: 1, kind: input, shape index: {}]
  %s2 = inlined_call_operand.vmem [shape: f32[3,16,16], index: 2, kind: input, shape index: {}]
  %s3 = inlined_call_operand.vmem [shape: bf16[3,32,256], index: 3, kind: input, shape index: {}]
  %s4 = inlined_call_operand.vmem [shape: f32[2,16,256], index: 4, kind: output, shape index: {}]
  %s5 = sld [smem:[#allocation0]]
  $region49: #{_cheb_conv_impl.1} parent=0
    _
  %s7 = ssub.s32 1, %s5
  %s8 = scalar_select 0, %s7, %s5
  loop: start=0, step=1, limit=4
  $region2: #{_cheb_conv_impl.1} parent=0 // loop_pre_header
    _
  $region3: #{_cheb_conv_impl.1} parent=0 // loop_header
    %s10 = sphi 0, %s14
    %p11 = scmp.ge.s32.totalorder %s10, 4
    %s20 = sphi 0, %s22
    %s23 = sphi 0, %s20
    %s24 = sphi 0, %s23
    %s40 = sphi 0, %s24
    %s46 = sphi 0, %s48
    %s49 = sphi 0, %s46
    %s50 = sphi 0, %s49
    %s66 = sphi 0, %s50
    %s70 = sphi 0, %s70
    %s72 = sphi 0, %s70
    %s73 = sphi 0, %s72
    %s87 = sphi 0, %s73
    %s91 = sphi 0, %s91
    %s93 = sphi 0, %s91
    %s94 = sphi 0, %s93
    %s108 = sphi 0, %s94
    %s114 = sphi 0, %s116
    %s117 = sphi 0, %s114
    %s118 = sphi 0, %s117
    %s134 = sphi 0, %s118
  $region4: #{_cheb_conv_impl.1} parent=0 // loop_header_branch
    %13 = sbr.rel (%p11) target = $region8
  $region5: #{_cheb_conv_impl.1} parent=0 // loop_body
    %s15 = ssub.s32 %s10, 1
    %s16 = ssub.s32 %s10, 2
    %s17 = sadd.s32 %s10, 1
    %s18 = ssub.s32 %s10, %s17
    %p19 = scmp.eq.s32.totalorder %s18, 0
    %s21 = sadd.s32 %s20, 1
    %s22 = scalar_select %p19, %s20, %s21
    %p25 = pneg %p19
    %p26 = scmp.eq.s32.totalorder %s10, 1
    %p27 = por %p25, %p26
    %p28 = scmp.ne.s32.totalorder %s20, %s23
    %p29 = scmp.eq.s32.totalorder %s10, 0
    %p30 = por %p28, %p29
    %p31 = scmp.ne.s32.totalorder %s20, %s23
    %p32 = scmp.eq.s32.totalorder %s15, 1
    %p33 = por %p31, %p32
    %p34 = scmp.ne.s32.totalorder %s23, %s24
    %p35 = scmp.eq.s32.totalorder %s15, 0
    %p36 = por %p34, %p35
    %p37 = scmp.ne.s32.totalorder %s23, %s24
    %p38 = scmp.eq.s32.totalorder %s16, 1
    %p39 = por %p37, %p38
    %p41 = scmp.ne.s32.totalorder %s24, %s40
    %p42 = scmp.eq.s32.totalorder %s16, 0
    %p43 = por %p41, %p42
    %s44 = ssub.s32 %s10, %s17
    %p45 = scmp.eq.s32.totalorder %s44, 0
    %s47 = sadd.s32 %s46, 1
    %s48 = scalar_select %p45, %s46, %s47
    %p51 = pneg %p45
    %p52 = scmp.eq.s32.totalorder %s10, 1
    %p53 = por %p51, %p52
    %p54 = scmp.ne.s32.totalorder %s46, %s49
    %p55 = scmp.eq.s32.totalorder %s10, 0
    %p56 = por %p54, %p55
    %p57 = scmp.ne.s32.totalorder %s46, %s49
    %p58 = scmp.eq.s32.totalorder %s15, 1
    %p59 = por %p57, %p58
    %p60 = scmp.ne.s32.totalorder %s49, %s50
    %p61 = scmp.eq.s32.totalorder %s15, 0
    %p62 = por %p60, %p61
    %p63 = scmp.ne.s32.totalorder %s49, %s50
    %p64 = scmp.eq.s32.totalorder %s16, 1
    %p65 = por %p63, %p64
    %p67 = scmp.ne.s32.totalorder %s50, %s66
    %p68 = scmp.eq.s32.totalorder %s16, 0
    %p69 = por %p67, %p68
    %s71 = sadd.s32 %s70, 1
    %p74 = scmp.eq.s32.totalorder %s10, 1
    %p75 = scmp.ne.s32.totalorder %s70, %s72
    %p76 = scmp.eq.s32.totalorder %s10, 0
    %p77 = por %p75, %p76
    %p78 = scmp.ne.s32.totalorder %s70, %s72
    %p79 = scmp.eq.s32.totalorder %s15, 1
    %p80 = por %p78, %p79
    %p81 = scmp.ne.s32.totalorder %s72, %s73
    %p82 = scmp.eq.s32.totalorder %s15, 0
    %p83 = por %p81, %p82
    %p84 = scmp.ne.s32.totalorder %s72, %s73
    %p85 = scmp.eq.s32.totalorder %s16, 1
    %p86 = por %p84, %p85
    %p88 = scmp.ne.s32.totalorder %s73, %s87
    %p89 = scmp.eq.s32.totalorder %s16, 0
    %p90 = por %p88, %p89
    %s92 = sadd.s32 %s91, 1
    %p95 = scmp.eq.s32.totalorder %s10, 1
    %p96 = scmp.ne.s32.totalorder %s91, %s93
    %p97 = scmp.eq.s32.totalorder %s10, 0
    %p98 = por %p96, %p97
    %p99 = scmp.ne.s32.totalorder %s91, %s93
    %p100 = scmp.eq.s32.totalorder %s15, 1
    %p101 = por %p99, %p100
    %p102 = scmp.ne.s32.totalorder %s93, %s94
    %p103 = scmp.eq.s32.totalorder %s15, 0
    %p104 = por %p102, %p103
    %p105 = scmp.ne.s32.totalorder %s93, %s94
    %p106 = scmp.eq.s32.totalorder %s16, 1
    %p107 = por %p105, %p106
    %p109 = scmp.ne.s32.totalorder %s94, %s108
    %p110 = scmp.eq.s32.totalorder %s16, 0
    %p111 = por %p109, %p110
    %s112 = ssub.s32 %s10, %s17
    %p113 = scmp.eq.s32.totalorder %s112, 0
    %s115 = sadd.s32 %s114, 1
    %s116 = scalar_select %p113, %s114, %s115
    %p119 = pneg %p113
    %p120 = scmp.eq.s32.totalorder %s10, 1
    %p121 = por %p119, %p120
    %p122 = scmp.ne.s32.totalorder %s114, %s117
    %p123 = scmp.eq.s32.totalorder %s10, 0
    %p124 = por %p122, %p123
    %p125 = scmp.ne.s32.totalorder %s114, %s117
    %p126 = scmp.eq.s32.totalorder %s15, 1
    %p127 = por %p125, %p126
    %p128 = scmp.ne.s32.totalorder %s117, %s118
    %p129 = scmp.eq.s32.totalorder %s15, 0
    %p130 = por %p128, %p129
    %p131 = scmp.ne.s32.totalorder %s117, %s118
    %p132 = scmp.eq.s32.totalorder %s16, 1
    %p133 = por %p131, %p132
    %p135 = scmp.ne.s32.totalorder %s118, %s134
    %p136 = scmp.eq.s32.totalorder %s16, 0
    %p137 = por %p135, %p136
    %p138 = scmp.le.s32.totalorder 1, %s10
    %p139 = scmp.lt.s32.totalorder %s10, 3
    %p140 = pnand %p138, %p139
    %p141 = pneg %p140
    // Predicated region
    $region9: #{_cheb_conv_impl.1} parent=5 // pred_check
      _
    $region10: #{_cheb_conv_impl.1} parent=5 // pred_check_branch
      %143 = sbr.rel (%p140) target = $region12
    $region11: #{_cheb_conv_impl.1} parent=5 // pred_region
      %s144 = ssub.s32 %s10, 1
      // Predicated region
      $region13: #{_cheb_conv_impl.1} parent=11 // pred_check
        %p145 = pneg %p83
      $region14: #{_cheb_conv_impl.1} parent=11 // pred_check_branch
        %147 = sbr.rel (%p145) target = $region16
      $region15: #{_cheb_conv_impl.1} parent=11 // pred_region
        _
      $region16: #{_cheb_conv_impl.1} parent=11 // pred_fallthru
        _
      // Predicated region
      $region17: #{_cheb_conv_impl.1} parent=11 // pred_check
        %p148 = pneg %p104
      $region18: #{_cheb_conv_impl.1} parent=11 // pred_check_branch
        %150 = sbr.rel (%p148) target = $region20
      $region19: #{_cheb_conv_impl.1} parent=11 // pred_region
        _
      $region20: #{_cheb_conv_impl.1} parent=11 // pred_fallthru
        _
    $region12: #{_cheb_conv_impl.1} parent=5 // pred_fallthru
      _
    %p151 = scmp.lt.s32.totalorder %s10, 2
    // Predicated region
    $region21: #{_cheb_conv_impl.1} parent=5 // pred_check
      %p152 = pneg %p151
    $region22: #{_cheb_conv_impl.1} parent=5 // pred_check_branch
      %154 = sbr.rel (%p152) target = $region24
    $region23: #{_cheb_conv_impl.1} parent=5 // pred_region
      // Predicated region
      $region25: #{_cheb_conv_impl.1} parent=23 // pred_check
        %p155 = pneg %p30
      $region26: #{_cheb_conv_impl.1} parent=23 // pred_check_branch
        %157 = sbr.rel (%p155) target = $region28
      $region27: #{_cheb_conv_impl.1} parent=23 // pred_region
        %p158 = scmp.lt.s32.totalorder %s10, 1
        %s159 = scalar_select %p158, %s10, 1
        %s160 = smul.addr %s159, 2
        %s161 = smul.addr %s160, 8
        %s162 = scalar_lea.vmem %s0, %s161
      $region28: #{_cheb_conv_impl.1} parent=23 // pred_fallthru
        _
      // Predicated region
      $region29: #{_cheb_conv_impl.1} parent=23 // pred_check
        %p163 = pneg %p56
      $region30: #{_cheb_conv_impl.1} parent=23 // pred_check_branch
        %165 = sbr.rel (%p163) target = $region32
      $region31: #{_cheb_conv_impl.1} parent=23 // pred_region
        %p166 = scmp.lt.s32.totalorder %s10, 1
        %s167 = scalar_select %p166, %s10, 1
        %s168 = smul.addr %s167, 2
        %s169 = smul.addr %s168, 8
        %s170 = scalar_lea.vmem %s1, %s169
      $region32: #{_cheb_conv_impl.1} parent=23 // pred_fallthru
        _
    $region24: #{_cheb_conv_impl.1} parent=5 // pred_fallthru
      _
    %p171 = scmp.le.s32.totalorder 1, %s10
    %p172 = scmp.lt.s32.totalorder %s10, 3
    %p173 = pnand %p171, %p172
    %p174 = pneg %p173
    // Predicated region
    $region33: #{_cheb_conv_impl.1} parent=5 // pred_check
      _
    $region34: #{_cheb_conv_impl.1} parent=5 // pred_check_branch
      %176 = sbr.rel (%p173) target = $region36
    $region35: #{_cheb_conv_impl.1} parent=5 // pred_region
      %s177 = ssub.s32 %s10, 1
      %p178 = scmp.lt.s32.totalorder %s15, 1
      %s179 = scalar_select %p178, %s15, 1
      %s180 = smul.addr %s179, 2
      %s181 = smul.addr %s180, 8
      %s182 = scalar_lea.vmem %s0, %s181
      %p183 = pneg %p36
      %p184 = pneg %p33
      %p185 = scmp.lt.s32.totalorder %s15, 1
      %s186 = scalar_select %p185, %s15, 1
      %s187 = smul.addr %s186, 2
      %s188 = smul.addr %s187, 8
      %s189 = scalar_lea.vmem %s1, %s188
      %p190 = pneg %p62
      %p191 = pneg %p59
      %p192 = pneg %p83
      %p193 = pneg %p80
      %p194 = pneg %p104
      %p195 = pneg %p101
      %p196 = pneg %p130
      %p197 = pneg %p127
      %p198 = scmp.lt.s32.totalorder %s15, 1
      %s199 = scalar_select %p198, %s15, 1
      %s200 = smul.addr %s199, 4
      %s201 = smul.addr %s200, 8
      %s202 = scalar_lea.vmem %s4, %s201
      %p203 = scmp.lt.s32.totalorder %s15, 1
      %s204 = scalar_select %p203, %s15, 1
      %s205 = smul.addr %s204, 2
      %s206 = smul.addr %s205, 8
      %s207 = scalar_lea.vmem %s0, %s206
      %p208 = scmp.lt.s32.totalorder %s15, 1
      %s209 = scalar_select %p208, %s15, 1
      %s210 = smul.addr %s209, 2
      %s211 = smul.addr %s210, 8
      %s212 = scalar_lea.vmem %s1, %s211
      %p213 = scmp.lt.s32.totalorder %s15, 1
      %s214 = scalar_select %p213, %s15, 1
      %s215 = smul.addr %s214, 4
      %s216 = smul.addr %s215, 8
      %s217 = scalar_lea.vmem %s4, %s216
      %v219 = vld [vmem:[%s2] sm:$0xff]
      %v220 = vld [vmem:[%s2 + $0x8] sm:$0xff]
      %v221 = vld [vmem:[%s2 + $0x10] sm:$0xff]
      %v222 = vld [vmem:[%s2 + $0x18] sm:$0xff]
      %v223 = vld [vmem:[%s2 + $0x20] sm:$0xff]
      %v224 = vld [vmem:[%s2 + $0x28] sm:$0xff]
      %v225 = vld [vmem:[%s212] sm:$0xff]
      %v226 = vld [vmem:[%s212 + $0x8] sm:$0xff]
      %v227 = vmul.f32 %v219, %v225
      %v228 = vmul.f32 %v220, %v226
      %v229 = vmul.f32 %v221, %v225
      %v230 = vmul.f32 %v222, %v226
      %v231 = vmul.f32 %v223, %v225
      %v232 = vmul.f32 %v224, %v226
      %v233 = vpack.c.bf16 %v228, %v227
      %v234 = vpack.c.bf16 %v230, %v229
      %v235 = vpack.c.bf16 %v232, %v231
      %v236 = vld [vmem:[%s207] sm:$0xff]
      %v237 = vld [vmem:[%s207 + $0x8] sm:$0xff]
      %v238 = vpack.c.bf16 %v237, %v236
      %vm239 = vcmask 130048
      %v241 = vsel %vm239, %v233, 0
      %v244 = vsel %vm239, %v234, 0
      %v247 = vsel %vm239, %v235, 0
      %249 = vmatprep.subr.bf16.mxu0 0
      %250 = vmatpush1.bf16.msra.mxu0 0
      %251 = vmatprep.subr.bf16.mxu0 0
      %252 = vmatpush1.bf16.msra.mxu0 0
      %253 = vmatprep.subr.bf16.mxu0 0
      %254 = vmatpush1.bf16.msra.mxu0 0
      %255 = vmatprep.subr.bf16.mxu0 0
      %256 = vmatpush1.bf16.msra.mxu0 0
      %257 = vmatprep.subr.bf16.mxu0 0
      %258 = vmatpush1.bf16.msra.mxu0 0
      %259 = vmatprep.subr.bf16.mxu0 0
      %260 = vmatpush1.bf16.msra.mxu0 0
      %261 = vmatprep.subr.bf16.mxu0 0
      %262 = vmatpush1.bf16.msra.mxu0 0
      %263 = vmatprep.subr.bf16.mxu0 0
      %264 = vmatpush1.bf16.msra.mxu0 %v238
      %265 = vmatprep.subr.bf16.mxu0 0
      %266 = vmatpush2.bf16.msra.mxu0 0
      %267 = vmatprep.subr.bf16.mxu0 0
      %268 = vmatpush2.bf16.msra.mxu0 0
      %269 = vmatprep.subr.bf16.mxu0 0
      %270 = vmatpush2.bf16.msra.mxu0 0
      %271 = vmatprep.subr.bf16.mxu0 0
      %272 = vmatpush2.bf16.msra.mxu0 0
      %273 = vmatprep.subr.bf16.mxu0 0
      %274 = vmatpush2.bf16.msra.mxu0 0
      %275 = vmatprep.subr.bf16.mxu0 0
      %276 = vmatpush2.bf16.msra.mxu0 0
      %277 = vmatprep.subr.bf16.mxu0 0
      %278 = vmatpush2.bf16.msra.mxu0 0
      %279 = vmatprep.subr.bf16.mxu0 0
      %280 = vmatpush2.bf16.msra.mxu0 0
      %281 = vmatprep.mubr.bf16.mxu0 0
      %282 = vmatmul.mubr.bf16.gmra.mxu0 %v241
      %v283 = vpop.f32.mrf.mxu0
      %v284 = vadd.f32 0.0, %v283
      %v285 = vpop.f32.mrf.mxu0
      %v286 = vpop.f32.mrf.mxu0
      %v287 = vadd.f32 0.0, %v286
      %v288 = vpop.f32.mrf.mxu0
      %289 = vmatprep.mubr.bf16.mxu0 0
      %290 = vmatmul.mubr.bf16.gmra.mxu0 %v244
      %v291 = vpop.f32.mrf.mxu0
      %v292 = vadd.f32 0.0, %v291
      %v293 = vpop.f32.mrf.mxu0
      %v294 = vpop.f32.mrf.mxu0
      %v295 = vadd.f32 0.0, %v294
      %v296 = vpop.f32.mrf.mxu0
      %297 = vmatprep.mubr.bf16.mxu0 0
      %298 = vmatmul.mubr.bf16.gmra.mxu0 %v247
      %v299 = vpop.f32.mrf.mxu0
      %v300 = vadd.f32 0.0, %v299
      %v301 = vpop.f32.mrf.mxu0
      %v302 = vpop.f32.mrf.mxu0
      %v303 = vadd.f32 0.0, %v302
      %v304 = vpop.f32.mrf.mxu0
      %305 = vdwg.mxu0
      %v306 = vpack.c.bf16 %v287, %v284
      %v307 = vpack.c.bf16 %v295, %v292
      %v308 = vpack.c.bf16 %v303, %v300
      %v309 = vld [vmem:[%s3] sm:$0xff]
      %v310 = vld [vmem:[%s3 + $0x8] sm:$0xff]
      %v311 = vld [vmem:[%s3 + $0x10] sm:$0xff]
      %v312 = vld [vmem:[%s3 + $0x18] sm:$0xff]
      %v313 = vld [vmem:[%s3 + $0x20] sm:$0xff]
      %v314 = vld [vmem:[%s3 + $0x28] sm:$0xff]
      %v315 = vld [vmem:[%s3 + $0x30] sm:$0xff]
      %v316 = vld [vmem:[%s3 + $0x38] sm:$0xff]
      %v317 = vld [vmem:[%s3 + $0x40] sm:$0xff]
      %v318 = vld [vmem:[%s3 + $0x48] sm:$0xff]
      %v319 = vld [vmem:[%s3 + $0x50] sm:$0xff]
      %v320 = vld [vmem:[%s3 + $0x58] sm:$0xff]
      %v325 = vunpack.c.l.b16 %v309
      %v326 = vunpack.c.h.b16 %v309
      %v327 = vunpack.c.l.b16 %v310
      %v328 = vunpack.c.h.b16 %v310
      %v329 = vunpack.c.l.b16 %v311
      %v330 = vunpack.c.h.b16 %v311
      %v331 = vunpack.c.l.b16 %v312
      %v332 = vunpack.c.h.b16 %v312
      %v333 = vpack.c.b16 %v327, %v325
      %v334 = vpack.c.b16 %v328, %v326
      %v335 = vpack.c.b16 %v331, %v329
      %v336 = vpack.c.b16 %v332, %v330
      %vm341 = vcmask 261120
      %v343 = vsel %vm341, %v306, 0
      %345 = vmatprep.subr.bf16.mxu0 0
      %346 = vmatpush1.bf16.msra.mxu0 0
      %347 = vmatprep.subr.bf16.mxu0 0
      %348 = vmatpush1.bf16.msra.mxu0 0
      %349 = vmatprep.subr.bf16.mxu0 0
      %350 = vmatpush1.bf16.msra.mxu0 0
      %351 = vmatprep.subr.bf16.mxu0 0
      %352 = vmatpush1.bf16.msra.mxu0 0
      %353 = vmatprep.subr.bf16.mxu0 0
      %354 = vmatpush1.bf16.msra.mxu0 0
      %355 = vmatprep.subr.bf16.mxu0 0
      %356 = vmatpush1.bf16.msra.mxu0 0
      %357 = vmatprep.subr.bf16.mxu0 %v336
      %358 = vmatpush1.bf16.msra.mxu0 %v335
      %359 = vmatprep.subr.bf16.mxu0 %v334
      %360 = vmatpush1.bf16.msra.mxu0 %v333
      %361 = vmatprep.subr.bf16.mxu0 0
      %362 = vmatpush2.bf16.msra.mxu0 0
      %363 = vmatprep.subr.bf16.mxu0 0
      %364 = vmatpush2.bf16.msra.mxu0 0
      %365 = vmatprep.subr.bf16.mxu0 0
      %366 = vmatpush2.bf16.msra.mxu0 0
      %367 = vmatprep.subr.bf16.mxu0 0
      %368 = vmatpush2.bf16.msra.mxu0 0
      %369 = vmatprep.subr.bf16.mxu0 0
      %370 = vmatpush2.bf16.msra.mxu0 0
      %371 = vmatprep.subr.bf16.mxu0 0
      %372 = vmatpush2.bf16.msra.mxu0 0
      %373 = vmatprep.subr.bf16.mxu0 0
      %374 = vmatpush2.bf16.msra.mxu0 0
      %375 = vmatprep.subr.bf16.mxu0 0
      %376 = vmatpush2.bf16.msra.mxu0 0
      %377 = vmatprep.mubr.bf16.mxu0 0
      %378 = vmatmul.mubr.bf16.gmra.mxu0 %v343
      %v379 = vpop.f32.mrf.mxu0
      %v380 = vadd.f32 0.0, %v379
      %v381 = vpop.f32.mrf.mxu0
      %v382 = vadd.f32 0.0, %v381
      %v383 = vpop.f32.mrf.mxu0
      %v384 = vadd.f32 0.0, %v383
      %v385 = vpop.f32.mrf.mxu0
      %v386 = vadd.f32 0.0, %v385
      %387 = vdwg.mxu0
      %v392 = vunpack.c.l.b16 %v313
      %v393 = vunpack.c.h.b16 %v313
      %v394 = vunpack.c.l.b16 %v314
      %v395 = vunpack.c.h.b16 %v314
      %v396 = vunpack.c.l.b16 %v315
      %v397 = vunpack.c.h.b16 %v315
      %v398 = vunpack.c.l.b16 %v316
      %v399 = vunpack.c.h.b16 %v316
      %v400 = vpack.c.b16 %v394, %v392
      %v401 = vpack.c.b16 %v395, %v393
      %v402 = vpack.c.b16 %v398, %v396
      %v403 = vpack.c.b16 %v399, %v397
      %v409 = vsel %vm341, %v307, 0
      %411 = vmatprep.subr.bf16.mxu0 0
      %412 = vmatpush1.bf16.msra.mxu0 0
      %413 = vmatprep.subr.bf16.mxu0 0
      %414 = vmatpush1.bf16.msra.mxu0 0
      %415 = vmatprep.subr.bf16.mxu0 0
      %416 = vmatpush1.bf16.msra.mxu0 0
      %417 = vmatprep.subr.bf16.mxu0 0
      %418 = vmatpush1.bf16.msra.mxu0 0
      %419 = vmatprep.subr.bf16.mxu0 0
      %420 = vmatpush1.bf16.msra.mxu0 0
      %421 = vmatprep.subr.bf16.mxu0 0
      %422 = vmatpush1.bf16.msra.mxu0 0
      %423 = vmatprep.subr.bf16.mxu0 %v403
      %424 = vmatpush1.bf16.msra.mxu0 %v402
      %425 = vmatprep.subr.bf16.mxu0 %v401
      %426 = vmatpush1.bf16.msra.mxu0 %v400
      %427 = vmatprep.subr.bf16.mxu0 0
      %428 = vmatpush2.bf16.msra.mxu0 0
      %429 = vmatprep.subr.bf16.mxu0 0
      %430 = vmatpush2.bf16.msra.mxu0 0
      %431 = vmatprep.subr.bf16.mxu0 0
      %432 = vmatpush2.bf16.msra.mxu0 0
      %433 = vmatprep.subr.bf16.mxu0 0
      %434 = vmatpush2.bf16.msra.mxu0 0
      %435 = vmatprep.subr.bf16.mxu0 0
      %436 = vmatpush2.bf16.msra.mxu0 0
      %437 = vmatprep.subr.bf16.mxu0 0
      %438 = vmatpush2.bf16.msra.mxu0 0
      %439 = vmatprep.subr.bf16.mxu0 0
      %440 = vmatpush2.bf16.msra.mxu0 0
      %441 = vmatprep.subr.bf16.mxu0 0
      %442 = vmatpush2.bf16.msra.mxu0 0
      %443 = vmatprep.mubr.bf16.mxu0 0
      %444 = vmatmul.mubr.bf16.gmra.mxu0 %v409
      %v445 = vpop.f32.mrf.mxu0
      %v446 = vadd.f32 0.0, %v445
      %v447 = vpop.f32.mrf.mxu0
      %v448 = vadd.f32 0.0, %v447
      %v449 = vpop.f32.mrf.mxu0
      %v450 = vadd.f32 0.0, %v449
      %v451 = vpop.f32.mrf.mxu0
      %v452 = vadd.f32 0.0, %v451
      %453 = vdwg.mxu0
      %v458 = vunpack.c.l.b16 %v317
      %v459 = vunpack.c.h.b16 %v317
      %v460 = vunpack.c.l.b16 %v318
      %v461 = vunpack.c.h.b16 %v318
      %v462 = vunpack.c.l.b16 %v319
      %v463 = vunpack.c.h.b16 %v319
      %v464 = vunpack.c.l.b16 %v320
      %v465 = vunpack.c.h.b16 %v320
      %v466 = vpack.c.b16 %v460, %v458
      %v467 = vpack.c.b16 %v461, %v459
      %v468 = vpack.c.b16 %v464, %v462
      %v469 = vpack.c.b16 %v465, %v463
      %v475 = vsel %vm341, %v308, 0
      %477 = vmatprep.subr.bf16.mxu0 0
      %478 = vmatpush1.bf16.msra.mxu0 0
      %479 = vmatprep.subr.bf16.mxu0 0
      %480 = vmatpush1.bf16.msra.mxu0 0
      %481 = vmatprep.subr.bf16.mxu0 0
      %482 = vmatpush1.bf16.msra.mxu0 0
      %483 = vmatprep.subr.bf16.mxu0 0
      %484 = vmatpush1.bf16.msra.mxu0 0
      %485 = vmatprep.subr.bf16.mxu0 0
      %486 = vmatpush1.bf16.msra.mxu0 0
      %487 = vmatprep.subr.bf16.mxu0 0
      %488 = vmatpush1.bf16.msra.mxu0 0
      %489 = vmatprep.subr.bf16.mxu0 %v469
      %490 = vmatpush1.bf16.msra.mxu0 %v468
      %491 = vmatprep.subr.bf16.mxu0 %v467
      %492 = vmatpush1.bf16.msra.mxu0 %v466
      %493 = vmatprep.subr.bf16.mxu0 0
      %494 = vmatpush2.bf16.msra.mxu0 0
      %495 = vmatprep.subr.bf16.mxu0 0
      %496 = vmatpush2.bf16.msra.mxu0 0
      %497 = vmatprep.subr.bf16.mxu0 0
      %498 = vmatpush2.bf16.msra.mxu0 0
      %499 = vmatprep.subr.bf16.mxu0 0
      %500 = vmatpush2.bf16.msra.mxu0 0
      %501 = vmatprep.subr.bf16.mxu0 0
      %502 = vmatpush2.bf16.msra.mxu0 0
      %503 = vmatprep.subr.bf16.mxu0 0
      %504 = vmatpush2.bf16.msra.mxu0 0
      %505 = vmatprep.subr.bf16.mxu0 0
      %506 = vmatpush2.bf16.msra.mxu0 0
      %507 = vmatprep.subr.bf16.mxu0 0
      %508 = vmatpush2.bf16.msra.mxu0 0
      %509 = vmatprep.mubr.bf16.mxu0 0
      %510 = vmatmul.mubr.bf16.gmra.mxu0 %v475
      %v511 = vpop.f32.mrf.mxu0
      %v512 = vadd.f32 0.0, %v511
      %v513 = vpop.f32.mrf.mxu0
      %v514 = vadd.f32 0.0, %v513
      %v515 = vpop.f32.mrf.mxu0
      %v516 = vadd.f32 0.0, %v515
      %v517 = vpop.f32.mrf.mxu0
      %v518 = vadd.f32 0.0, %v517
      %519 = vdwg.mxu0
      %v520 = vadd.f32 %v380, %v446
      %v521 = vadd.f32 %v520, %v512
      %v522 = vadd.f32 %v382, %v448
      %v523 = vadd.f32 %v522, %v514
      %v524 = vadd.f32 %v384, %v450
      %v525 = vadd.f32 %v524, %v516
      %v526 = vadd.f32 %v386, %v452
      %v527 = vadd.f32 %v526, %v518
      %v528 = vmax.f32 %v521, 0.0
      %v529 = vmax.f32 %v523, 0.0
      %v530 = vmax.f32 %v525, 0.0
      %v531 = vmax.f32 %v527, 0.0
      %532 = vst [vmem:[%s217] sm:$0xff] %v528
      %533 = vst [vmem:[%s217 + $0x8] sm:$0xff] %v529
      %534 = vst [vmem:[%s217 + $0x10] sm:$0xff] %v530
      %535 = vst [vmem:[%s217 + $0x18] sm:$0xff] %v531
      %p536 = scmp.lt.s32.totalorder %s15, 1
      %s537 = scalar_select %p536, %s15, 1
      %s538 = smul.addr %s537, 4
      %s539 = smul.addr %s538, 8
      %s540 = scalar_lea.vmem %s4, %s539
      // Predicated region
      $region37: #{_cheb_conv_impl.1} parent=35 // pred_check
        %p541 = pneg %p127
      $region38: #{_cheb_conv_impl.1} parent=35 // pred_check_branch
        %543 = sbr.rel (%p541) target = $region40
      $region39: #{_cheb_conv_impl.1} parent=35 // pred_region
        _
      $region40: #{_cheb_conv_impl.1} parent=35 // pred_fallthru
        _
    $region36: #{_cheb_conv_impl.1} parent=5 // pred_fallthru
      _
    %p544 = scmp.le.s32.totalorder 2, %s10
    // Predicated region
    $region41: #{_cheb_conv_impl.1} parent=5 // pred_check
      %p545 = pneg %p544
    $region42: #{_cheb_conv_impl.1} parent=5 // pred_check_branch
      %547 = sbr.rel (%p545) target = $region44
    $region43: #{_cheb_conv_impl.1} parent=5 // pred_region
      %s548 = ssub.s32 %s10, 2
      // Predicated region
      $region45: #{_cheb_conv_impl.1} parent=43 // pred_check
        %p549 = pneg %p133
      $region46: #{_cheb_conv_impl.1} parent=43 // pred_check_branch
        %551 = sbr.rel (%p549) target = $region48
      $region47: #{_cheb_conv_impl.1} parent=43 // pred_region
        %p552 = scmp.lt.s32.totalorder %s16, 1
        %s553 = scalar_select %p552, %s16, 1
        %s554 = smul.addr %s553, 4
        %s555 = smul.addr %s554, 8
        %s556 = scalar_lea.vmem %s4, %s555
      $region48: #{_cheb_conv_impl.1} parent=43 // pred_fallthru
        _
    $region44: #{_cheb_conv_impl.1} parent=5 // pred_fallthru
      _
  $region6: #{_cheb_conv_impl.1} parent=0 // loop_footer
    %s14 = sadd.s32 1, %s10
  $region7: #{_cheb_conv_impl.1} parent=0 // loop_footer_branch
    %9 = sbr.rel target = $region3
  $region8: #{_cheb_conv_impl.1} parent=0 // loop_exit
    _

</llo_original>
